<compile_context>
chip_gen: v6e
topology: v6e:2x2x1
jax: 0.10.0
libtpu: 0.0.40
codegen_flags: <defaults>
</compile_context>

<pallas_src>
import functools

import jax
import jax.numpy as jnp
from jax.experimental import pallas as pl
from jax.experimental.pallas import tpu as pltpu


def _encode_sym_kernel(x_ref, p_ref, w_ref, o_ref):
    # x_ref: (tile_p, W)       lane-packed input rows (W = pack*input_dim, 128 when packed)
    # p_ref: (2, W)            rows: [inv_c ; b_scaled], lane-tiled to match packing
    # w_ref: (W, pack*out_dim) block-diagonal fused weights kron(eye(pack), a + a_sym)
    # o_ref: (tile_p, pack*out_dim)
    x = x_ref[...]
    # (x - b)/c as x*(1/c) - b*(1/c): VALU only; the (1, W) -> (tile_p, W) broadcast
    # needs a single replicated vreg per param row, negligible per step.
    z = x * p_ref[0:1, :] - p_ref[1:2, :]
    g = jnp.exp(-(z * z))                       # only EUP op in the kernel
    o_ref[...] = jnp.dot(g, w_ref[...],
                         preferred_element_type=jnp.float32).astype(o_ref.dtype)


def _round_up(v, m):
    return -(-v // m) * m


def _is_multi_tensorcore_chip():
    # Heuristic: v7x (and v4 megacore) expose 2 TensorCores per chip; v5e/v6e have 1.
    try:
        kind = jax.devices()[0].device_kind.lower()
    except Exception:
        return False
    return any(tag in kind for tag in ("v7", "v4"))


@functools.partial(jax.jit, static_argnames=("input_dim", "tile_m"))
def encode_sym(x, weight_a, weight_a_sym, weight_b, weight_c, *, input_dim, tile_m=8192):
    # Flatten to (N, D) rows, exactly as the PyTorch forward does.
    x2 = x.reshape(-1, input_dim).astype(jnp.float32)
    n = x2.shape[0]
    out_dim = weight_a.shape[1]

    # Tiny operands precomputed once in the wrapper (outside the hot loop).
    w_sum = (weight_a + weight_a_sym).astype(jnp.float32)        # (D, out_dim)
    inv_c = (1.0 / weight_c).astype(jnp.float32)                 # (1, D)
    b_scaled = weight_b.astype(jnp.float32) * inv_c              # (1, D)
    params = jnp.concatenate([inv_c, b_scaled], axis=0)          # (2, D)

    # Lane packing: put `pack` logical rows side-by-side in the 128 lanes.
    # Only for small out_dim (the block-diagonal weight multiplies nominal MXU
    # MACs by `pack`, which is free while K underuses the MXU depth).
    if (input_dim < 128) and (128 % input_dim == 0) and (out_dim <= 32):
        pack = 128 // input_dim
    else:
        pack = 1

    width = pack * input_dim
    owidth = pack * out_dim

    params_p = jnp.tile(params, (1, pack)) if pack > 1 else params            # (2, width)
    w_bd = (jnp.kron(jnp.eye(pack, dtype=jnp.float32), w_sum)
            if pack > 1 else w_sum)                                           # (width, owidth)

    # Tiling over packed rows.  Large tiles amortize the ~0.35 us per-step
    # overhead; only force >= 2 grid steps on multi-TC chips so both cores work.
    n_packed = -(-n // pack)
    max_tile_p = max(8, _round_up(max(1, tile_m // pack), 8))
    if _is_multi_tensorcore_chip() and n_packed > 8:
        per_core = _round_up(-(-n_packed // 2), 8)
        tile_p = min(max_tile_p, per_core)
    else:
        tile_p = min(max_tile_p, _round_up(n_packed, 8))
    n_packed_pad = _round_up(n_packed, tile_p)
    n_pad = n_packed_pad * pack

    if n_pad != n:
        x2 = jnp.pad(x2, ((0, n_pad - n), (0, 0)))   # padded rows are sliced off below
    x_p = x2.reshape(n_packed_pad, width)            # free: contiguous, row-major

    grid = (n_packed_pad // tile_p,)

    out = pl.pallas_call(
        _encode_sym_kernel,
        out_shape=jax.ShapeDtypeStruct((n_packed_pad, owidth), jnp.float32),
        grid_spec=pltpu.PrefetchScalarGridSpec(
            num_scalar_prefetch=0,
            grid=grid,
            in_specs=[
                pl.BlockSpec((tile_p, width), lambda i: (i, 0)),   # streaming x rows
                pl.BlockSpec((2, width), lambda i: (0, 0)),        # resident [inv_c; b/c]
                pl.BlockSpec((width, owidth), lambda i: (0, 0)),   # resident fused weights
            ],
            out_specs=pl.BlockSpec((tile_p, owidth), lambda i: (i, 0)),
        ),
        compiler_params=pltpu.CompilerParams(
            dimension_semantics=("parallel",),
        ),
    )(x_p, params_p, w_bd)

    # Unpack lanes back to logical rows (free, contiguous) and drop row padding.
    return out.reshape(n_pad, out_dim)[:n]


def init_params(key, input_dim, out_dim=1, a_cof=0.1, b_cof=0.1, c_cof=0.1,
                tie_sym=True, c_min=1e-2):
    # Deterministic analogue of the PyTorch __init__ (randn / rand draws).
    # tie_sym=True reproduces the module exactly (weight_a_sym = -weight_a, so the
    # forward output is identically zero).  For a meaningful numerical self-test
    # use tie_sym=False (independent weight_a_sym).
    ka, ks, kb, kc = jax.random.split(key, 4)
    weight_a = a_cof * jax.random.normal(ka, (input_dim, out_dim), jnp.float32)
    if tie_sym:
        weight_a_sym = -weight_a
    else:
        weight_a_sym = a_cof * jax.random.normal(ks, (input_dim, out_dim), jnp.float32)
    weight_b = b_cof * (jax.random.uniform(kb, (1, input_dim), jnp.float32) - 0.5)
    weight_c = c_cof * jax.random.normal(kc, (1, input_dim), jnp.float32)
    # Clamp |weight_c| away from zero so (x-b)/c (and 1/c) stay finite; the
    # PyTorch module has the same numerical hazard but no guard.
    weight_c = jnp.where(jnp.abs(weight_c) < c_min,
                         jnp.sign(weight_c) * c_min + (weight_c == 0) * c_min,
                         weight_c)
    return weight_a, weight_a_sym, weight_b, weight_c


def _reference(x, weight_a, weight_a_sym, weight_b, weight_c, input_dim):
    x2 = x.reshape(-1, input_dim).astype(jnp.float32)
    g = jnp.exp(-jnp.square((x2 - weight_b) / weight_c))
    return g @ weight_a + g @ weight_a_sym


if __name__ == "__main__":
    input_dim = 32
    out_dim = 1

    key = jax.random.PRNGKey(0)
    kx1, kx2, kp = jax.random.split(key, 3)

    # Independent (non-tied) weights so the self-test is not trivially zero.
    weight_a, weight_a_sym, weight_b, weight_c = init_params(
        kp, input_dim, out_dim, tie_sym=False)

    ok = True

    # Small case matching the module's expected use (x reshaped to (-1, input_dim)).
    x_small = jax.random.normal(kx1, (2, 4, input_dim), jnp.float32)
    y = jax.block_until_ready(encode_sym(
        x_small, weight_a, weight_a_sym, weight_b, weight_c, input_dim=input_dim))
    y_ref = _reference(x_small, weight_a, weight_a_sym, weight_b, weight_c, input_dim)
    ok &= y.shape == (8, out_dim)
    ok &= bool(jnp.allclose(y, y_ref, atol=3e-5, rtol=1e-4))

    # Larger, non-multiple-of-tile case: exercises lane packing, row padding and
    # (on multi-TC parts) a multi-step grid.
    x_big = jax.random.normal(kx2, (125, 8, input_dim), jnp.float32)   # 1000 rows
    y2 = jax.block_until_ready(encode_sym(
        x_big, weight_a, weight_a_sym, weight_b, weight_c, input_dim=input_dim))
    y2_ref = _reference(x_big, weight_a, weight_a_sym, weight_b, weight_c, input_dim)
    ok &= y2.shape == (1000, out_dim)
    ok &= bool(jnp.allclose(y2, y2_ref, atol=3e-5, rtol=1e-4))

    assert ok, "mismatch vs reference"
    print("KERNEL_OK")
</pallas_src>

<mosaic_0001>
module attributes {stable_mosaic.version = 11 : i64} {
  func.func @_encode_sym_kernel(%arg0: i32, %arg1: memref<8x128xf32, #tpu.memory_space<vmem>>, %arg2: memref<2x128xf32, #tpu.memory_space<vmem>>, %arg3: memref<128x4xf32, #tpu.memory_space<vmem>>, %arg4: memref<8x4xf32, #tpu.memory_space<vmem>>) attributes {dimension_semantics = [#tpu.dimension_semantics<parallel>], iteration_bounds = array<i64: 1>, scalar_prefetch = 0 : i64, scratch_operands = 0 : i64, tpu.core_type = #tpu.core_type<tc>, window_params = [{transform_indices = @transform_0, window_bounds = array<i64: 8, 128>}, {pipeline_mode = #tpu.pipeline_mode<synchronous>, transform_indices = @transform_1, window_bounds = array<i64: 2, 128>}, {pipeline_mode = #tpu.pipeline_mode<synchronous>, transform_indices = @transform_2, window_bounds = array<i64: 128, 4>}, {transform_indices = @transform_3, window_bounds = array<i64: 8, 4>}]} {
    %c0 = arith.constant 0 : index
    %c0_0 = arith.constant 0 : index
    %0 = vector.load %arg1[%c0, %c0_0] : memref<8x128xf32, #tpu.memory_space<vmem>>, vector<8x128xf32>
    %c0_1 = arith.constant 0 : index
    %c0_2 = arith.constant 0 : index
    %1 = vector.load %arg2[%c0_1, %c0_2] : memref<2x128xf32, #tpu.memory_space<vmem>>, vector<1x128xf32>
    %2 = vector.broadcast %1 : vector<1x128xf32> to vector<8x128xf32>
    %3 = arith.mulf %0, %2 : vector<8x128xf32>
    %c1 = arith.constant 1 : index
    %c0_3 = arith.constant 0 : index
    %4 = vector.load %arg2[%c1, %c0_3] : memref<2x128xf32, #tpu.memory_space<vmem>>, vector<1x128xf32>
    %5 = vector.broadcast %4 : vector<1x128xf32> to vector<8x128xf32>
    %6 = arith.subf %3, %5 : vector<8x128xf32>
    %7 = arith.mulf %6, %6 : vector<8x128xf32>
    %cst = arith.constant 0.000000e+00 : f32
    %8 = vector.broadcast %cst : f32 to vector<8x128xf32>
    %9 = arith.subf %8, %7 : vector<8x128xf32>
    %10 = math.exp %9 : vector<8x128xf32>
    %c0_4 = arith.constant 0 : index
    %c0_5 = arith.constant 0 : index
    %11 = vector.load %arg3[%c0_4, %c0_5] : memref<128x4xf32, #tpu.memory_space<vmem>>, vector<128x4xf32>
    %cst_6 = arith.constant dense<0.000000e+00> : vector<8x4xf32>
    %12 = tpu.matmul %10, %11, %cst_6 {dimension_numbers = #tpu.dot_dimension_numbers<[1], [0], [0], [1], [0, 0, 1, 1], [], []>} : vector<8x128xf32>, vector<128x4xf32>, vector<8x4xf32> -> vector<8x4xf32>
    %c0_7 = arith.constant 0 : index
    %c0_8 = arith.constant 0 : index
    %13 = vector.load %arg4[%c0_7, %c0_8] : memref<8x4xf32, #tpu.memory_space<vmem>>, vector<8x4xf32>
    tpu.vector_store %arg4[%c0_7, %c0_8], %12 {strides = array<i32>} : memref<8x4xf32, #tpu.memory_space<vmem>>, vector<8x4xf32>,
    return
  }
  func.func @transform_0(%arg0: i32) -> (i32, i32) {
    %c0_i32 = arith.constant 0 : i32
    %c0_i32_0 = arith.constant 0 : i32
    return %arg0, %c0_i32 : i32, i32
  }
  func.func @transform_1(%arg0: i32) -> (i32, i32) {
    %c0_i32 = arith.constant 0 : i32
    %c0_i32_0 = arith.constant 0 : i32
    %c0_i32_1 = arith.constant 0 : i32
    return %c0_i32, %c0_i32_0 : i32, i32
  }
  func.func @transform_2(%arg0: i32) -> (i32, i32) {
    %c0_i32 = arith.constant 0 : i32
    %c0_i32_0 = arith.constant 0 : i32
    %c0_i32_1 = arith.constant 0 : i32
    return %c0_i32, %c0_i32_0 : i32, i32
  }
  func.func @transform_3(%arg0: i32) -> (i32, i32) {
    %c0_i32 = arith.constant 0 : i32
    %c0_i32_0 = arith.constant 0 : i32
    return %arg0, %c0_i32 : i32, i32
  }
}

</mosaic_0001>

<llo_original>
// kernel: tile.9
$region0: #{tile.9}
  %s0 = inlined_call_operand.vmem [shape: f32[2,4,32], index: 0, kind: input, shape index: {}]
  %s1 = inlined_call_operand.vmem [shape: f32[2,128], index: 1, kind: output, shape index: {}]
  $region1: #{tile.9} parent=0
    #allocation0 [shape = 'u8[4096]{0}', space=vmem, size = 0x1000, scoped, tag = 'scoped mem for output reshape']
    #allocation1 [shape = 'u8[8192]{0}', space=vmem, size = 0x2000, scoped, tag = 'scoped mem for input reshape']
    %s3 = sshll.u32 1, 4
    %s4 = ssub.s32 %s3, 1
    %s5 = scalar_lea.vmem %s0, 4
    %v6 = vld [vmem:[%s5] sm:%s4]
    %s7 = scalar_lea.vmem [#allocation1], 8
    %8 = vst [vmem:[%s7] sm:%s4] %v6
    %v9 = vld [vmem:[%s0] sm:%s4]
    %10 = vst [vmem:[#allocation1] sm:%s4] %v9
    %s11 = smov 3
    %v12 = vld [vmem:[#allocation1] ss:$8 sm:%s11]
    %vm13 = vcmask 261120
    %14 = vst.msk [vmem:[#allocation0] sm:$0x3] %vm13, %v12
    %s15 = scalar_lea.vmem [#allocation1], 3
    %s16 = smov 3
    %v17 = vld [vmem:[%s15] ss:$8 sm:%s16]
    %18 = vrot.lane.b32.xlu0 %v17, 96
    %v19 = vpop.permute.xlu0 %18
    %vm20 = vcmask 1048320
    %21 = vst.msk [vmem:[#allocation0] sm:$0x3] %vm20, %v19
    %s22 = scalar_lea.vmem [#allocation1], 2
    %s23 = smov 3
    %v24 = vld [vmem:[%s22] ss:$8 sm:%s23]
    %25 = vrot.lane.b32.xlu0 %v24, 64
    %v26 = vpop.permute.xlu0 %25
    %vm27 = vcmask 785920
    %28 = vst.msk [vmem:[#allocation0] sm:$0x3] %vm27, %v26
    %s29 = scalar_lea.vmem [#allocation1], 1
    %s30 = smov 3
    %v31 = vld [vmem:[%s29] ss:$8 sm:%s30]
    %32 = vrot.lane.b32.xlu0 %v31, 32
    %v33 = vpop.permute.xlu0 %32
    %vm34 = vcmask 523520
    %35 = vst.msk [vmem:[#allocation0] sm:$0x3] %vm34, %v33
    %s37 = sshll.u32 1, 2
    %s38 = ssub.s32 %s37, 1
    %v40 = vld [vmem:[#allocation0] sm:%s38]
    %s41 = sshll.u32 1, 2
    %s42 = ssub.s32 %s41, 1
    %43 = vst [vmem:[%s1] sm:%s42] %v40

// kernel: encode_sym.1
$region0: #{encode_sym.1}
  #allocation0 [shape = 'u32[]', space=smem, size = 0x4, offset = 0x4, fixed_abs, tag = 'smem constant byte address 0x4 - core index']
  #allocation1 [shape = 'u32[144,128]{1,0:T(1,128)}', space=vmem, size = 0x12000, scoped, tag = 'internal scratch']
  %s0 = inlined_call_operand.vmem [shape: f32[8,128], index: 0, kind: input, shape index: {}]
  %s1 = inlined_call_operand.vmem [shape: f32[2,128], index: 1, kind: input, shape index: {}]
  %s2 = inlined_call_operand.vmem [shape: f32[128,4], index: 2, kind: input, shape index: {}]
  %s3 = inlined_call_operand.vmem [shape: f32[8,4], index: 3, kind: output, shape index: {}]
  %s4 = sld [smem:[#allocation0]]
  $region22: #{encode_sym.1} parent=0
    _
  %s6 = ssub.s32 1, %s4
  %s7 = scalar_select 0, %s6, %s4
  // Predicated region
  $region2: #{encode_sym.1} parent=0 // pred_check
    _
  $region3: #{encode_sym.1} parent=0 // pred_check_branch
    %9 = sbr.rel (0) target = $region5
  $region4: #{encode_sym.1} parent=0 // pred_region
    _
  $region5: #{encode_sym.1} parent=0 // pred_fallthru
    _
  // Predicated region
  $region6: #{encode_sym.1} parent=0 // pred_check
    _
  $region7: #{encode_sym.1} parent=0 // pred_check_branch
    %11 = sbr.rel (0) target = $region9
  $region8: #{encode_sym.1} parent=0 // pred_region
    _
  $region9: #{encode_sym.1} parent=0 // pred_fallthru
    _
  // Predicated region
  $region10: #{encode_sym.1} parent=0 // pred_check
    _
  $region11: #{encode_sym.1} parent=0 // pred_check_branch
    %13 = sbr.rel (0) target = $region13
  $region12: #{encode_sym.1} parent=0 // pred_region
    _
  $region13: #{encode_sym.1} parent=0 // pred_fallthru
    _
  %v14 = vld [vmem:[%s0] sm:$0xff]
  %v15 = vld [vmem:[%s1] sm:$0x1]
  %v16 = vlaneseq
  %v17 = vshrl.u32 %v16, 7
  %v18 = vsub.s32 0, %v17
  %v19 = vrot.slane %v15, %v18
  %v20 = vmul.f32 %v14, %v19
  %v21 = vld [vmem:[%s1 + $0x1] sm:$0x1]
  %v22 = vlaneseq
  %v23 = vshrl.u32 %v22, 7
  %v24 = vsub.s32 0, %v23
  %v25 = vrot.slane %v21, %v24
  %v26 = vsub.f32 %v20, %v25
  %v27 = vmul.f32 %v26, %v26
  %v28 = vsub.f32 0.0, %v27
  %v29 = vmul.f32 %v28, 1.442695
  %v30 = vpow.pop %v29
  %v31 = vld [vmem:[%s2] sm:$0xff]
  %v32 = vld [vmem:[%s2 + $0x8] sm:$0xff]
  %v33 = vld [vmem:[%s2 + $0x10] sm:$0xff]
  %v34 = vld [vmem:[%s2 + $0x18] sm:$0xff]
  %v35 = vld [vmem:[%s2 + $0x20] sm:$0xff]
  %v36 = vld [vmem:[%s2 + $0x28] sm:$0xff]
  %v37 = vld [vmem:[%s2 + $0x30] sm:$0xff]
  %v38 = vld [vmem:[%s2 + $0x38] sm:$0xff]
  %v39 = vld [vmem:[%s2 + $0x40] sm:$0xff]
  %v40 = vld [vmem:[%s2 + $0x48] sm:$0xff]
  %v41 = vld [vmem:[%s2 + $0x50] sm:$0xff]
  %v42 = vld [vmem:[%s2 + $0x58] sm:$0xff]
  %v43 = vld [vmem:[%s2 + $0x60] sm:$0xff]
  %v44 = vld [vmem:[%s2 + $0x68] sm:$0xff]
  %v45 = vld [vmem:[%s2 + $0x70] sm:$0xff]
  %v46 = vld [vmem:[%s2 + $0x78] sm:$0xff]
  %47 = vmatprep.subr.mxu0 0.0
  %48 = vmatpush1.msra.mxu0 %v46
  %49 = vmatprep.subr.mxu0 0.0
  %50 = vmatpush1.msra.mxu0 %v45
  %51 = vmatprep.subr.mxu0 0.0
  %52 = vmatpush1.msra.mxu0 %v44
  %53 = vmatprep.subr.mxu0 0.0
  %54 = vmatpush1.msra.mxu0 %v43
  %55 = vmatprep.subr.mxu0 0.0
  %56 = vmatpush1.msra.mxu0 %v42
  %57 = vmatprep.subr.mxu0 0.0
  %58 = vmatpush1.msra.mxu0 %v41
  %59 = vmatprep.subr.mxu0 0.0
  %60 = vmatpush1.msra.mxu0 %v40
  %61 = vmatprep.subr.mxu0 0.0
  %62 = vmatpush1.msra.mxu0 %v39
  %63 = vmatprep.subr.mxu0 0.0
  %64 = vmatpush1.msra.mxu0 %v38
  %65 = vmatprep.subr.mxu0 0.0
  %66 = vmatpush1.msra.mxu0 %v37
  %67 = vmatprep.subr.mxu0 0.0
  %68 = vmatpush1.msra.mxu0 %v36
  %69 = vmatprep.subr.mxu0 0.0
  %70 = vmatpush1.msra.mxu0 %v35
  %71 = vmatprep.subr.mxu0 0.0
  %72 = vmatpush1.msra.mxu0 %v34
  %73 = vmatprep.subr.mxu0 0.0
  %74 = vmatpush1.msra.mxu0 %v33
  %75 = vmatprep.subr.mxu0 0.0
  %76 = vmatpush1.msra.mxu0 %v32
  %77 = vmatprep.subr.mxu0 0.0
  %78 = vmatpush1.msra.mxu0 %v31
  %79 = vmatprep.subr.mxu0 0.0
  %80 = vmatpush2.msra.mxu0 0.0
  %81 = vmatprep.subr.mxu0 0.0
  %82 = vmatpush2.msra.mxu0 0.0
  %83 = vmatprep.subr.mxu0 0.0
  %84 = vmatpush2.msra.mxu0 0.0
  %85 = vmatprep.subr.mxu0 0.0
  %86 = vmatpush2.msra.mxu0 0.0
  %87 = vmatprep.subr.mxu0 0.0
  %88 = vmatpush2.msra.mxu0 0.0
  %89 = vmatprep.subr.mxu0 0.0
  %90 = vmatpush2.msra.mxu0 0.0
  %91 = vmatprep.subr.mxu0 0.0
  %92 = vmatpush2.msra.mxu0 0.0
  %93 = vmatprep.subr.mxu0 0.0
  %94 = vmatpush2.msra.mxu0 0.0
  %95 = vmatprep.subr.mxu0 0.0
  %96 = vmatpush2.msra.mxu0 0.0
  %97 = vmatprep.subr.mxu0 0.0
  %98 = vmatpush2.msra.mxu0 0.0
  %99 = vmatprep.subr.mxu0 0.0
  %100 = vmatpush2.msra.mxu0 0.0
  %101 = vmatprep.subr.mxu0 0.0
  %102 = vmatpush2.msra.mxu0 0.0
  %103 = vmatprep.subr.mxu0 0.0
  %104 = vmatpush2.msra.mxu0 0.0
  %105 = vmatprep.subr.mxu0 0.0
  %106 = vmatpush2.msra.mxu0 0.0
  %107 = vmatprep.subr.mxu0 0.0
  %108 = vmatpush2.msra.mxu0 0.0
  %109 = vmatprep.subr.mxu0 0.0
  %110 = vmatpush2.msra.mxu0 0.0
  %111 = vmatprep.mubr.f32.mxu0 0.0
  %112 = vmatmul.mubr.f32.gmra.mxu0 %v30
  %v113 = vpop.f32.mrf.mxu0
  %v114 = vadd.f32 0.0, %v113
  %v115 = vpop.f32.mrf.mxu0
  %116 = vdwg.mxu0
  %vm117 = vcmask 31744
  %118 = vst.msk [vmem:[%s3] sm:$0xff] %vm117, %v114
  // Predicated region
  $region14: #{encode_sym.1} parent=0 // pred_check
    _
  $region15: #{encode_sym.1} parent=0 // pred_check_branch
    %120 = sbr.rel (0) target = $region17
  $region16: #{encode_sym.1} parent=0 // pred_region
    _
  $region17: #{encode_sym.1} parent=0 // pred_fallthru
    _
  // Predicated region
  $region18: #{encode_sym.1} parent=0 // pred_check
    _
  $region19: #{encode_sym.1} parent=0 // pred_check_branch
    %122 = sbr.rel (0) target = $region21
  $region20: #{encode_sym.1} parent=0 // pred_region
    _
  $region21: #{encode_sym.1} parent=0 // pred_fallthru
    _

</llo_original>
